<compile_context>
chip_gen: v6e
topology: v6e:2x2x1
jax: 0.10.0
libtpu: 0.0.40
codegen_flags: <defaults>
</compile_context>

<pallas_src>
import functools
import math

import jax
import jax.numpy as jnp
from jax import lax
from jax.experimental import pallas as pl
from jax.experimental.pallas import tpu as pltpu

_VMEM_LIMIT = 48 * 1024 * 1024      # explicit scoped-VMEM cap, safe on v5e/v6e/v7x


def _pick_tile(n, cap):
    """Largest MXU-friendly tile (256/128 multiples preferred) dividing n, <= cap."""
    if n <= cap:
        return n
    for t in (512, 256, 128, 64, 32, 16, 8):
        if t <= cap and n % t == 0:
            return t
    return n


def _compiler_params(semantics):
    return pltpu.CompilerParams(dimension_semantics=semantics,
                                vmem_limit_bytes=_VMEM_LIMIT)


# ------------------------- in-kernel math helpers -------------------------

def _gelu(x):
    # tanh-approx GELU: one EUP tanh + a few VALU ops (vs ~15-op erf polynomial).
    # TODO(synk): switch back to an exact erf GELU if bit-parity with the default
    # (erf-based) torch.nn.functional.gelu is required.
    c = 0.7978845608028654  # sqrt(2/pi)
    return 0.5 * x * (1.0 + jnp.tanh(c * (x + 0.044715 * x * x * x)))


def _layernorm(x, g, b, eps=1e-5):
    mu = jnp.mean(x, axis=-1, keepdims=True)
    xc = x - mu
    var = jnp.mean(xc * xc, axis=-1, keepdims=True)
    return xc * lax.rsqrt(var + eps) * g + b


# ------------------------- conv kernels (shifted matmuls, no im2col) -------------------------

def _conv_s1_kernel(x_ref, w_ref, b_ref, o_ref):
    """K=3, stride-1 conv = three shifted matmuls, fused with GELU."""
    t_out = o_ref.shape[1]
    xp = x_ref[0].astype(jnp.bfloat16)                       # (T+2, Cin)
    acc = jnp.dot(xp[0:t_out], w_ref[0], preferred_element_type=jnp.float32)
    acc += jnp.dot(xp[1:t_out + 1], w_ref[1], preferred_element_type=jnp.float32)
    acc += jnp.dot(xp[2:t_out + 2], w_ref[2], preferred_element_type=jnp.float32)
    o_ref[0] = _gelu(acc + b_ref[...])


def conv1_gelu(x, w, b):
    """x: (B, T, Cin) f32; w: (3, Cin, Cout) bf16; b: (1, Cout) f32."""
    B, T, Cin = x.shape
    Cout = w.shape[-1]
    xp = jnp.pad(x, ((0, 0), (1, 1), (0, 0)))
    return pl.pallas_call(
        _conv_s1_kernel,
        grid=(B,),
        in_specs=[
            pl.BlockSpec((1, T + 2, Cin), lambda bb: (bb, 0, 0)),
            pl.BlockSpec((3, Cin, Cout), lambda bb: (0, 0, 0)),
            pl.BlockSpec((1, Cout), lambda bb: (0, 0)),
        ],
        out_specs=pl.BlockSpec((1, T, Cout), lambda bb: (bb, 0, 0)),
        out_shape=jax.ShapeDtypeStruct((B, T, Cout), jnp.float32),
        compiler_params=_compiler_params(("parallel",)),
    )(xp, w, b)


def _conv_s2_kernel(xe_ref, xo_ref, w_ref, b_ref, pos_ref, o_ref):
    """K=3, stride-2 conv (even/odd rows pre-split) + GELU + positional embedding."""
    t_out = o_ref.shape[1]
    xe = xe_ref[0].astype(jnp.bfloat16)                      # (T_out+1, Cin) -> taps 0, 2
    xo = xo_ref[0].astype(jnp.bfloat16)                      # (T_out, Cin)   -> tap 1
    acc = jnp.dot(xe[0:t_out], w_ref[0], preferred_element_type=jnp.float32)
    acc += jnp.dot(xo, w_ref[1], preferred_element_type=jnp.float32)
    acc += jnp.dot(xe[1:t_out + 1], w_ref[2], preferred_element_type=jnp.float32)
    o_ref[0] = _gelu(acc + b_ref[...]) + pos_ref[...]


def conv2_gelu_pos(x, w, b, pos):
    """x: (B, T, Cin) f32. stride-2 / pad-1 conv, GELU and pos-embedding add fused."""
    B, T, Cin = x.shape
    Cout = w.shape[-1]
    t_out = (T + 2 - 3) // 2 + 1
    xp = jnp.pad(x, ((0, 0), (1, 1), (0, 0)))                # (B, T+2, Cin)
    xe = xp[:, 0:2 * t_out + 1:2, :]                         # even padded rows
    xo = xp[:, 1:2 * t_out:2, :]                             # odd padded rows
    pos = pos[:t_out].astype(jnp.float32)
    return pl.pallas_call(
        _conv_s2_kernel,
        grid=(B,),
        in_specs=[
            pl.BlockSpec((1, t_out + 1, Cin), lambda bb: (bb, 0, 0)),
            pl.BlockSpec((1, t_out, Cin), lambda bb: (bb, 0, 0)),
            pl.BlockSpec((3, Cin, Cout), lambda bb: (0, 0, 0)),
            pl.BlockSpec((1, Cout), lambda bb: (0, 0)),
            pl.BlockSpec((t_out, Cout), lambda bb: (0, 0)),
        ],
        out_specs=pl.BlockSpec((1, t_out, Cout), lambda bb: (bb, 0, 0)),
        out_shape=jax.ShapeDtypeStruct((B, t_out, Cout), jnp.float32),
        compiler_params=_compiler_params(("parallel",)),
    )(xe, xo, w, b, pos)


# ------------------------- attention kernel (heads streamed on last grid axis) -------------------------

def _attn_kernel(xq_ref, xkv_ref, ln1g_ref, ln1b_ref, wq_ref, bq_ref, wk_ref,
                 wv_ref, bv_ref, wo_ref, bo_ref, o_ref,
                 acc_ref, hq_ref, hk_ref):
    h = pl.program_id(2)

    @pl.when(h == 0)
    def _():
        xq = xq_ref[0]                                       # (tq, C) f32
        hq_ref[...] = _layernorm(xq, ln1g_ref[...], ln1b_ref[...]).astype(jnp.bfloat16)
        hk_ref[...] = _layernorm(xkv_ref[0], ln1g_ref[...], ln1b_ref[...]).astype(jnp.bfloat16)
        acc_ref[...] = xq + bo_ref[...]                      # residual + out-proj bias

    hq = hq_ref[...]                                         # (tq, C) bf16
    hk = hk_ref[...]                                         # (T,  C) bf16
    # per-head projections; dh**-0.25 scale is folded into wq/bq/wk at init
    q = jnp.dot(hq, wq_ref[0], preferred_element_type=jnp.float32) + bq_ref[0]   # (tq, dh)
    k = jnp.dot(hk, wk_ref[0], preferred_element_type=jnp.float32)               # (T, dh), no bias
    v = jnp.dot(hk, wv_ref[0], preferred_element_type=jnp.float32) + bv_ref[0]   # (T, dh)

    s = lax.dot_general(q.astype(jnp.bfloat16), k.astype(jnp.bfloat16),
                        (((1,), (1,)), ((), ())),
                        preferred_element_type=jnp.float32)                       # (tq, T)
    s = s - jnp.max(s, axis=-1, keepdims=True)
    e = jnp.exp(s)
    p = e * pl.reciprocal(jnp.sum(e, axis=-1, keepdims=True), approx=True)
    ctx = jnp.dot(p.astype(jnp.bfloat16), v.astype(jnp.bfloat16),
                  preferred_element_type=jnp.float32)                             # (tq, dh)
    acc_ref[...] += jnp.dot(ctx.astype(jnp.bfloat16), wo_ref[0],
                            preferred_element_type=jnp.float32)                   # (tq, C)

    @pl.when(h == pl.num_programs(2) - 1)
    def _():
        o_ref[0] = acc_ref[...]


def attention_block(x, p, n_head):
    B, T, C = x.shape
    dh = C // n_head
    tq = _pick_tile(T, 256)                                  # query-tile axis: >1 parallel unit at real T
    grid = (B, T // tq, n_head)
    return pl.pallas_call(
        _attn_kernel,
        grid=grid,
        in_specs=[
            pl.BlockSpec((1, tq, C), lambda b, qi, h: (b, qi, 0)),   # x (query tile / residual)
            pl.BlockSpec((1, T, C), lambda b, qi, h: (b, 0, 0)),     # x (full, for K/V)
            pl.BlockSpec((1, C), lambda b, qi, h: (0, 0)),           # ln1_g
            pl.BlockSpec((1, C), lambda b, qi, h: (0, 0)),           # ln1_b
            pl.BlockSpec((1, C, dh), lambda b, qi, h: (h, 0, 0)),    # wq  (per head)
            pl.BlockSpec((1, 1, dh), lambda b, qi, h: (h, 0, 0)),    # bq
            pl.BlockSpec((1, C, dh), lambda b, qi, h: (h, 0, 0)),    # wk
            pl.BlockSpec((1, C, dh), lambda b, qi, h: (h, 0, 0)),    # wv
            pl.BlockSpec((1, 1, dh), lambda b, qi, h: (h, 0, 0)),    # bv
            pl.BlockSpec((1, dh, C), lambda b, qi, h: (h, 0, 0)),    # wo
            pl.BlockSpec((1, C), lambda b, qi, h: (0, 0)),           # bo
        ],
        out_specs=pl.BlockSpec((1, tq, C), lambda b, qi, h: (b, qi, 0)),
        out_shape=jax.ShapeDtypeStruct((B, T, C), jnp.float32),
        scratch_shapes=[
            pltpu.VMEM((tq, C), jnp.float32),    # accumulator (residual + sum over heads)
            pltpu.VMEM((tq, C), jnp.bfloat16),   # cached LN1(x_q)
            pltpu.VMEM((T, C), jnp.bfloat16),    # cached LN1(x_full)
        ],
        compiler_params=_compiler_params(("parallel", "parallel", "arbitrary")),
    )(x, x, p["ln1_g"], p["ln1_b"], p["wq"], p["bq"], p["wk"],
      p["wv"], p["bv"], p["wo"], p["bo"])


# ------------------------- MLP kernel (hidden dim streamed on last grid axis) -------------------------

def _mlp_kernel(x_ref, ln2g_ref, ln2b_ref, w1_ref, c1_ref, w2_ref, c2_ref,
                lpg_ref, lpb_ref, o_ref, acc_ref, h2_ref, *, apply_final_ln):
    f = pl.program_id(2)

    @pl.when(f == 0)
    def _():
        x = x_ref[0]                                         # (tm, C) f32
        h2_ref[...] = _layernorm(x, ln2g_ref[...], ln2b_ref[...]).astype(jnp.bfloat16)
        acc_ref[...] = x + c2_ref[...]                       # residual + second-linear bias

    m = _gelu(jnp.dot(h2_ref[...], w1_ref[...],
                      preferred_element_type=jnp.float32) + c1_ref[...])          # (tm, tf)
    acc_ref[...] += jnp.dot(m.astype(jnp.bfloat16), w2_ref[...],
                            preferred_element_type=jnp.float32)                   # (tm, C)

    @pl.when(f == pl.num_programs(2) - 1)
    def _():
        out = acc_ref[...]
        if apply_final_ln:                                   # ln_post fused into last block
            out = _layernorm(out, lpg_ref[...], lpb_ref[...])
        o_ref[0] = out


def mlp_block(x, p, ln_post_g, ln_post_b, apply_final_ln):
    B, T, C = x.shape
    n_mlp = p["w1"].shape[-1]
    tm = _pick_tile(T, 256)
    tf = _pick_tile(n_mlp, 512)                              # stream w1/w2 over hidden-dim tiles
    grid = (B, T // tm, n_mlp // tf)
    kernel = functools.partial(_mlp_kernel, apply_final_ln=apply_final_ln)
    return pl.pallas_call(
        kernel,
        grid=grid,
        in_specs=[
            pl.BlockSpec((1, tm, C), lambda b, m, f: (b, m, 0)),     # x
            pl.BlockSpec((1, C), lambda b, m, f: (0, 0)),            # ln2_g
            pl.BlockSpec((1, C), lambda b, m, f: (0, 0)),            # ln2_b
            pl.BlockSpec((C, tf), lambda b, m, f: (0, f)),           # w1 tile
            pl.BlockSpec((1, tf), lambda b, m, f: (0, f)),           # c1 tile
            pl.BlockSpec((tf, C), lambda b, m, f: (f, 0)),           # w2 tile
            pl.BlockSpec((1, C), lambda b, m, f: (0, 0)),            # c2
            pl.BlockSpec((1, C), lambda b, m, f: (0, 0)),            # ln_post_g
            pl.BlockSpec((1, C), lambda b, m, f: (0, 0)),            # ln_post_b
        ],
        out_specs=pl.BlockSpec((1, tm, C), lambda b, m, f: (b, m, 0)),
        out_shape=jax.ShapeDtypeStruct((B, T, C), jnp.float32),
        scratch_shapes=[
            pltpu.VMEM((tm, C), jnp.float32),    # accumulator
            pltpu.VMEM((tm, C), jnp.bfloat16),   # cached LN2(x) tile
        ],
        compiler_params=_compiler_params(("parallel", "parallel", "arbitrary")),
    )(x, p["ln2_g"], p["ln2_b"], p["w1"], p["c1"], p["w2"], p["c2"],
      ln_post_g, ln_post_b)


# ------------------------- standalone row-tiled layernorm (only used if n_layer == 0) -------------------------

def _ln_kernel(x_ref, g_ref, b_ref, o_ref):
    o_ref[0] = _layernorm(x_ref[0], g_ref[...], b_ref[...])


def layernorm_rows(x, g, b):
    B, T, C = x.shape
    tm = _pick_tile(T, 512)
    return pl.pallas_call(
        _ln_kernel,
        grid=(B, T // tm),
        in_specs=[pl.BlockSpec((1, tm, C), lambda bb, m: (bb, m, 0)),
                  pl.BlockSpec((1, C), lambda bb, m: (0, 0)),
                  pl.BlockSpec((1, C), lambda bb, m: (0, 0))],
        out_specs=pl.BlockSpec((1, tm, C), lambda bb, m: (bb, m, 0)),
        out_shape=jax.ShapeDtypeStruct((B, T, C), jnp.float32),
        compiler_params=_compiler_params(("parallel", "parallel")),
    )(x, g, b)


# ------------------------- parameters & forward -------------------------

def sinusoids(length, channels, max_timescale=10000.0):
    assert channels % 2 == 0
    log_inc = math.log(max_timescale) / (channels // 2 - 1)
    inv = jnp.exp(-log_inc * jnp.arange(channels // 2, dtype=jnp.float32))
    t = jnp.arange(length, dtype=jnp.float32)[:, None] * inv[None, :]
    return jnp.concatenate([jnp.sin(t), jnp.cos(t)], axis=1)


def init_params(key, n_mels, n_ctx, n_state, n_head, n_layer):
    scale = 0.05
    n_mlp = 4 * n_state
    dh = n_state // n_head
    qk_scale = float(dh) ** -0.25            # folded into wq/bq and wk once, at init
    keys = iter(jax.random.split(key, 4 + 11 * n_layer))

    def dense(shape):
        return scale * jax.random.normal(next(keys), shape, dtype=jnp.float32)

    def split_in(w):   # (C, C) -> (H, C, dh): per-head output columns
        return jnp.transpose(w.reshape(n_state, n_head, dh), (1, 0, 2))

    def split_out(w):  # (C, C) -> (H, dh, C): per-head input rows
        return w.reshape(n_head, dh, n_state)

    params = {
        "conv1_w": dense((3, n_mels, n_state)).astype(jnp.bfloat16),
        "conv1_b": dense((1, n_state)),
        "conv2_w": dense((3, n_state, n_state)).astype(jnp.bfloat16),
        "conv2_b": dense((1, n_state)),
        "pos": sinusoids(n_ctx, n_state),
        "ln_post_g": jnp.ones((1, n_state), jnp.float32),
        "ln_post_b": jnp.zeros((1, n_state), jnp.float32),
        "blocks": [],
    }
    for _ in range(n_layer):
        wq = dense((n_state, n_state)) * qk_scale
        bq = dense((1, n_state)) * qk_scale
        wk = dense((n_state, n_state)) * qk_scale       # key projection has no bias
        wv = dense((n_state, n_state))
        bv = dense((1, n_state))
        wo = dense((n_state, n_state))
        blk = {
            "ln1_g": jnp.ones((1, n_state), jnp.float32),
            "ln1_b": jnp.zeros((1, n_state), jnp.float32),
            "wq": split_in(wq).astype(jnp.bfloat16),
            "bq": bq.reshape(n_head, 1, dh),
            "wk": split_in(wk).astype(jnp.bfloat16),
            "wv": split_in(wv).astype(jnp.bfloat16),
            "bv": bv.reshape(n_head, 1, dh),
            "wo": split_out(wo).astype(jnp.bfloat16),
            "bo": dense((1, n_state)),
            "ln2_g": jnp.ones((1, n_state), jnp.float32),
            "ln2_b": jnp.zeros((1, n_state), jnp.float32),
            "w1": dense((n_state, n_mlp)).astype(jnp.bfloat16),
            "c1": dense((1, n_mlp)),
            "w2": dense((n_mlp, n_state)).astype(jnp.bfloat16),
            "c2": dense((1, n_state)),
        }
        params["blocks"].append(blk)
    return params


def my_audio_encoder_forward(params, x_bmt, n_head):
    # PyTorch NCW (B, n_mels, T) -> channels-last (B, T, n_mels)
    x = jnp.transpose(x_bmt, (0, 2, 1)).astype(jnp.float32)
    x = conv1_gelu(x, params["conv1_w"], params["conv1_b"])
    # stride-2 conv with GELU and positional-embedding add fused in its epilogue
    x = conv2_gelu_pos(x, params["conv2_w"], params["conv2_b"], params["pos"])
    n_blocks = len(params["blocks"])
    for i, blk in enumerate(params["blocks"]):
        x = attention_block(x, blk, n_head)
        x = mlp_block(x, blk, params["ln_post_g"], params["ln_post_b"],
                      apply_final_ln=(i == n_blocks - 1))   # ln_post fused into last block
    if n_blocks == 0:
        x = layernorm_rows(x, params["ln_post_g"], params["ln_post_b"])
    return x


if __name__ == "__main__":
    B, n_mels, n_ctx_in = 2, 8, 16
    n_ctx = (n_ctx_in + 2 - 3) // 2 + 1     # length after the stride-2 conv = 8
    n_state, n_head, n_layer = 32, 4, 2

    key = jax.random.PRNGKey(0)
    pk, xk = jax.random.split(key)
    params = init_params(pk, n_mels, n_ctx, n_state, n_head, n_layer)
    x = jax.random.normal(xk, (B, n_mels, n_ctx_in), dtype=jnp.float32)

    out = my_audio_encoder_forward(params, x, n_head)
    out = jax.block_until_ready(out)
    assert out.shape == (B, n_ctx, n_state), out.shape
    assert bool(jnp.all(jnp.isfinite(out)))
    print("KERNEL_OK")
</pallas_src>

<mosaic_0001>
module attributes {stable_mosaic.version = 11 : i64} {
  func.func @_conv_s1_kernel(%arg0: i32, %arg1: memref<1x18x8xf32, #tpu.memory_space<vmem>>, %arg2: memref<3x8x32xbf16, #tpu.memory_space<vmem>>, %arg3: memref<1x32xf32, #tpu.memory_space<vmem>>, %arg4: memref<1x16x32xf32, #tpu.memory_space<vmem>>) attributes {dimension_semantics = [#tpu.dimension_semantics<parallel>], iteration_bounds = array<i64: 2>, scalar_prefetch = 0 : i64, scratch_operands = 0 : i64, tpu.core_type = #tpu.core_type<tc>, window_params = [{transform_indices = @transform_0, window_bounds = array<i64: 1, 18, 8>}, {pipeline_mode = #tpu.pipeline_mode<synchronous>, transform_indices = @transform_1, window_bounds = array<i64: 3, 8, 32>}, {pipeline_mode = #tpu.pipeline_mode<synchronous>, transform_indices = @transform_2, window_bounds = array<i64: 1, 32>}, {transform_indices = @transform_3, window_bounds = array<i64: 1, 16, 32>}]} {
    %c0 = arith.constant 0 : index
    %c0_0 = arith.constant 0 : index
    %c0_1 = arith.constant 0 : index
    %0 = vector.load %arg1[%c0, %c0_0, %c0_1] : memref<1x18x8xf32, #tpu.memory_space<vmem>>, vector<1x18x8xf32>
    %1 = vector.shape_cast %0 : vector<1x18x8xf32> to vector<18x8xf32>
    %2 = arith.truncf %1 : vector<18x8xf32> to vector<18x8xbf16>
    %3 = vector.extract_strided_slice %2 {offsets = [0, 0], sizes = [16, 8], strides = [1, 1]} : vector<18x8xbf16> to vector<16x8xbf16>
    %c0_2 = arith.constant 0 : index
    %c0_3 = arith.constant 0 : index
    %c0_4 = arith.constant 0 : index
    %4 = vector.load %arg2[%c0_2, %c0_3, %c0_4] : memref<3x8x32xbf16, #tpu.memory_space<vmem>>, vector<1x8x32xbf16>
    %5 = vector.shape_cast %4 : vector<1x8x32xbf16> to vector<8x32xbf16>
    %cst = arith.constant dense<0.000000e+00> : vector<16x32xf32>
    %6 = tpu.matmul %3, %5, %cst {dimension_numbers = #tpu.dot_dimension_numbers<[1], [0], [0], [1], [0, 0, 1, 1], [], []>} : vector<16x8xbf16>, vector<8x32xbf16>, vector<16x32xf32> -> vector<16x32xf32>
    %7 = vector.extract_strided_slice %2 {offsets = [1, 0], sizes = [16, 8], strides = [1, 1]} : vector<18x8xbf16> to vector<16x8xbf16>
    %c1 = arith.constant 1 : index
    %c0_5 = arith.constant 0 : index
    %c0_6 = arith.constant 0 : index
    %8 = vector.load %arg2[%c1, %c0_5, %c0_6] : memref<3x8x32xbf16, #tpu.memory_space<vmem>>, vector<1x8x32xbf16>
    %9 = vector.shape_cast %8 : vector<1x8x32xbf16> to vector<8x32xbf16>
    %cst_7 = arith.constant dense<0.000000e+00> : vector<16x32xf32>
    %10 = tpu.matmul %7, %9, %cst_7 {dimension_numbers = #tpu.dot_dimension_numbers<[1], [0], [0], [1], [0, 0, 1, 1], [], []>} : vector<16x8xbf16>, vector<8x32xbf16>, vector<16x32xf32> -> vector<16x32xf32>
    %11 = arith.addf %6, %10 : vector<16x32xf32>
    %12 = vector.extract_strided_slice %2 {offsets = [2, 0], sizes = [16, 8], strides = [1, 1]} : vector<18x8xbf16> to vector<16x8xbf16>
    %c2 = arith.constant 2 : index
    %c0_8 = arith.constant 0 : index
    %c0_9 = arith.constant 0 : index
    %13 = vector.load %arg2[%c2, %c0_8, %c0_9] : memref<3x8x32xbf16, #tpu.memory_space<vmem>>, vector<1x8x32xbf16>
    %14 = vector.shape_cast %13 : vector<1x8x32xbf16> to vector<8x32xbf16>
    %cst_10 = arith.constant dense<0.000000e+00> : vector<16x32xf32>
    %15 = tpu.matmul %12, %14, %cst_10 {dimension_numbers = #tpu.dot_dimension_numbers<[1], [0], [0], [1], [0, 0, 1, 1], [], []>} : vector<16x8xbf16>, vector<8x32xbf16>, vector<16x32xf32> -> vector<16x32xf32>
    %16 = arith.addf %11, %15 : vector<16x32xf32>
    %c0_11 = arith.constant 0 : index
    %c0_12 = arith.constant 0 : index
    %17 = vector.load %arg3[%c0_11, %c0_12] : memref<1x32xf32, #tpu.memory_space<vmem>>, vector<1x32xf32>
    %18 = vector.broadcast %17 : vector<1x32xf32> to vector<16x32xf32>
    %19 = arith.addf %16, %18 : vector<16x32xf32>
    %cst_13 = arith.constant 5.000000e-01 : f32
    %20 = vector.broadcast %cst_13 : f32 to vector<16x32xf32>
    %21 = arith.mulf %20, %19 : vector<16x32xf32>
    %cst_14 = arith.constant 4.471500e-02 : f32
    %22 = vector.broadcast %cst_14 : f32 to vector<16x32xf32>
    %23 = arith.mulf %22, %19 : vector<16x32xf32>
    %24 = arith.mulf %23, %19 : vector<16x32xf32>
    %25 = arith.mulf %24, %19 : vector<16x32xf32>
    %26 = arith.addf %19, %25 : vector<16x32xf32>
    %cst_15 = arith.constant 0.797884583 : f32
    %27 = vector.broadcast %cst_15 : f32 to vector<16x32xf32>
    %28 = arith.mulf %27, %26 : vector<16x32xf32>
    %29 = math.tanh %28 : vector<16x32xf32>
    %cst_16 = arith.constant 1.000000e+00 : f32
    %30 = vector.broadcast %cst_16 : f32 to vector<16x32xf32>
    %31 = arith.addf %30, %29 : vector<16x32xf32>
    %32 = arith.mulf %21, %31 : vector<16x32xf32>
    %c0_17 = arith.constant 0 : index
    %c0_18 = arith.constant 0 : index
    %c0_19 = arith.constant 0 : index
    %33 = vector.load %arg4[%c0_17, %c0_18, %c0_19] : memref<1x16x32xf32, #tpu.memory_space<vmem>>, vector<1x16x32xf32>
    %34 = vector.shape_cast %33 : vector<1x16x32xf32> to vector<16x32xf32>
    %35 = vector.shape_cast %32 : vector<16x32xf32> to vector<1x16x32xf32>
    tpu.vector_store %arg4[%c0_17, %c0_18, %c0_19], %35 {strides = array<i32>} : memref<1x16x32xf32, #tpu.memory_space<vmem>>, vector<1x16x32xf32>,
    return
  }
  func.func @transform_0(%arg0: i32) -> (i32, i32, i32) {
    %c0_i32 = arith.constant 0 : i32
    %c0_i32_0 = arith.constant 0 : i32
    %c0_i32_1 = arith.constant 0 : i32
    return %arg0, %c0_i32, %c0_i32_0 : i32, i32, i32
  }
  func.func @transform_1(%arg0: i32) -> (i32, i32, i32) {
    %c0_i32 = arith.constant 0 : i32
    %c0_i32_0 = arith.constant 0 : i32
    %c0_i32_1 = arith.constant 0 : i32
    %c0_i32_2 = arith.constant 0 : i32
    return %c0_i32, %c0_i32_0, %c0_i32_1 : i32, i32, i32
  }
  func.func @transform_2(%arg0: i32) -> (i32, i32) {
    %c0_i32 = arith.constant 0 : i32
    %c0_i32_0 = arith.constant 0 : i32
    %c0_i32_1 = arith.constant 0 : i32
    return %c0_i32, %c0_i32_0 : i32, i32
  }
  func.func @transform_3(%arg0: i32) -> (i32, i32, i32) {
    %c0_i32 = arith.constant 0 : i32
    %c0_i32_0 = arith.constant 0 : i32
    %c0_i32_1 = arith.constant 0 : i32
    return %arg0, %c0_i32, %c0_i32_0 : i32, i32, i32
  }
}

</mosaic_0001>

<llo_original>
// kernel: tpu_custom_call.1
$region0: #{tpu_custom_call.1}
  #allocation0 [shape = 'u32[]', space=smem, size = 0x4, offset = 0x4, fixed_abs, tag = 'smem constant byte address 0x4 - core index']
  #allocation1 [shape = 'u32[144,128]{1,0:T(1,128)}', space=vmem, size = 0x12000, scoped, tag = 'internal scratch']
  %s0 = inlined_call_operand.vmem [shape: f32[2,18,8], index: 0, kind: input, shape index: {}]
  %s1 = inlined_call_operand.vmem [shape: bf16[3,8,32], index: 1, kind: input, shape index: {}]
  %s2 = inlined_call_operand.vmem [shape: f32[1,32], index: 2, kind: input, shape index: {}]
  %s3 = inlined_call_operand.hbm [shape: f32[2,16,32], index: 3, kind: output, shape index: {}]
  %s4 = sld [smem:[#allocation0]]
  $region45: #{tpu_custom_call.1} parent=0
    _
  %s6 = ssub.s32 1, %s4
  %s7 = scalar_select 0, %s6, %s4
  $region1: #{tpu_custom_call.1} parent=0
    #allocation2 [shape = 'u8[16384]{0}', space=vmem, size = 0x4000, scoped, tag = 'output window, operand 0']
    #allocation3 [shape = 's32[2]{0}', space=sflag, size = 0x8, scoped, tag = 'scoped memory for tpu_custom_call.1']
    %8 = vsyncpa [#allocation3], 0
    %s9 = scalar_lea.sflag [#allocation3], 1
    %10 = vsyncpa %s9, 0
    loop: start=0, step=1, limit=4
    $region2: #{tpu_custom_call.1} parent=1 // loop_pre_header
      _
    $region3: #{tpu_custom_call.1} parent=1 // loop_header
      %s12 = sphi 0, %s16
      %p13 = scmp.ge.s32.totalorder %s12, 4
      %s22 = sphi 0, %s24
      %s25 = sphi 0, %s22
      %s26 = sphi 0, %s25
      %s42 = sphi 0, %s26
      %s46 = sphi 0, %s46
      %s48 = sphi 0, %s46
      %s49 = sphi 0, %s48
      %s63 = sphi 0, %s49
      %s67 = sphi 0, %s67
      %s69 = sphi 0, %s67
      %s70 = sphi 0, %s69
      %s84 = sphi 0, %s70
      %s90 = sphi 0, %s92
      %s93 = sphi 0, %s90
      %s94 = sphi 0, %s93
      %s110 = sphi 0, %s94
    $region4: #{tpu_custom_call.1} parent=1 // loop_header_branch
      %15 = sbr.rel (%p13) target = $region8
    $region5: #{tpu_custom_call.1} parent=1 // loop_body
      %s17 = ssub.s32 %s12, 1
      %s18 = ssub.s32 %s12, 2
      %s19 = sadd.s32 %s12, 1
      %s20 = ssub.s32 %s12, %s19
      %p21 = scmp.eq.s32.totalorder %s20, 0
      %s23 = sadd.s32 %s22, 1
      %s24 = scalar_select %p21, %s22, %s23
      %p27 = pneg %p21
      %p28 = scmp.eq.s32.totalorder %s12, 1
      %p29 = por %p27, %p28
      %p30 = scmp.ne.s32.totalorder %s22, %s25
      %p31 = scmp.eq.s32.totalorder %s12, 0
      %p32 = por %p30, %p31
      %p33 = scmp.ne.s32.totalorder %s22, %s25
      %p34 = scmp.eq.s32.totalorder %s17, 1
      %p35 = por %p33, %p34
      %p36 = scmp.ne.s32.totalorder %s25, %s26
      %p37 = scmp.eq.s32.totalorder %s17, 0
      %p38 = por %p36, %p37
      %p39 = scmp.ne.s32.totalorder %s25, %s26
      %p40 = scmp.eq.s32.totalorder %s18, 1
      %p41 = por %p39, %p40
      %p43 = scmp.ne.s32.totalorder %s26, %s42
      %p44 = scmp.eq.s32.totalorder %s18, 0
      %p45 = por %p43, %p44
      %s47 = sadd.s32 %s46, 1
      %p50 = scmp.eq.s32.totalorder %s12, 1
      %p51 = scmp.ne.s32.totalorder %s46, %s48
      %p52 = scmp.eq.s32.totalorder %s12, 0
      %p53 = por %p51, %p52
      %p54 = scmp.ne.s32.totalorder %s46, %s48
      %p55 = scmp.eq.s32.totalorder %s17, 1
      %p56 = por %p54, %p55
      %p57 = scmp.ne.s32.totalorder %s48, %s49
      %p58 = scmp.eq.s32.totalorder %s17, 0
      %p59 = por %p57, %p58
      %p60 = scmp.ne.s32.totalorder %s48, %s49
      %p61 = scmp.eq.s32.totalorder %s18, 1
      %p62 = por %p60, %p61
      %p64 = scmp.ne.s32.totalorder %s49, %s63
      %p65 = scmp.eq.s32.totalorder %s18, 0
      %p66 = por %p64, %p65
      %s68 = sadd.s32 %s67, 1
      %p71 = scmp.eq.s32.totalorder %s12, 1
      %p72 = scmp.ne.s32.totalorder %s67, %s69
      %p73 = scmp.eq.s32.totalorder %s12, 0
      %p74 = por %p72, %p73
      %p75 = scmp.ne.s32.totalorder %s67, %s69
      %p76 = scmp.eq.s32.totalorder %s17, 1
      %p77 = por %p75, %p76
      %p78 = scmp.ne.s32.totalorder %s69, %s70
      %p79 = scmp.eq.s32.totalorder %s17, 0
      %p80 = por %p78, %p79
      %p81 = scmp.ne.s32.totalorder %s69, %s70
      %p82 = scmp.eq.s32.totalorder %s18, 1
      %p83 = por %p81, %p82
      %p85 = scmp.ne.s32.totalorder %s70, %s84
      %p86 = scmp.eq.s32.totalorder %s18, 0
      %p87 = por %p85, %p86
      %s88 = ssub.s32 %s12, %s19
      %p89 = scmp.eq.s32.totalorder %s88, 0
      %s91 = sadd.s32 %s90, 1
      %s92 = scalar_select %p89, %s90, %s91
      %p95 = pneg %p89
      %p96 = scmp.eq.s32.totalorder %s12, 1
      %p97 = por %p95, %p96
      %p98 = scmp.ne.s32.totalorder %s90, %s93
      %p99 = scmp.eq.s32.totalorder %s12, 0
      %p100 = por %p98, %p99
      %p101 = scmp.ne.s32.totalorder %s90, %s93
      %p102 = scmp.eq.s32.totalorder %s17, 1
      %p103 = por %p101, %p102
      %p104 = scmp.ne.s32.totalorder %s93, %s94
      %p105 = scmp.eq.s32.totalorder %s17, 0
      %p106 = por %p104, %p105
      %p107 = scmp.ne.s32.totalorder %s93, %s94
      %p108 = scmp.eq.s32.totalorder %s18, 1
      %p109 = por %p107, %p108
      %p111 = scmp.ne.s32.totalorder %s94, %s110
      %p112 = scmp.eq.s32.totalorder %s18, 0
      %p113 = por %p111, %p112
      %p114 = scmp.le.s32.totalorder 1, %s12
      %p115 = scmp.lt.s32.totalorder %s12, 3
      %p116 = pnand %p114, %p115
      %p117 = pneg %p116
      // Predicated region
      $region9: #{tpu_custom_call.1} parent=5 // pred_check
        _
      $region10: #{tpu_custom_call.1} parent=5 // pred_check_branch
        %119 = sbr.rel (%p116) target = $region12
      $region11: #{tpu_custom_call.1} parent=5 // pred_region
        %s120 = ssub.s32 %s12, 1
        // Predicated region
        $region13: #{tpu_custom_call.1} parent=11 // pred_check
          %p121 = pneg %p59
        $region14: #{tpu_custom_call.1} parent=11 // pred_check_branch
          %123 = sbr.rel (%p121) target = $region16
        $region15: #{tpu_custom_call.1} parent=11 // pred_region
          _
        $region16: #{tpu_custom_call.1} parent=11 // pred_fallthru
          _
        // Predicated region
        $region17: #{tpu_custom_call.1} parent=11 // pred_check
          %p124 = pneg %p80
        $region18: #{tpu_custom_call.1} parent=11 // pred_check_branch
          %126 = sbr.rel (%p124) target = $region20
        $region19: #{tpu_custom_call.1} parent=11 // pred_region
          _
        $region20: #{tpu_custom_call.1} parent=11 // pred_fallthru
          _
      $region12: #{tpu_custom_call.1} parent=5 // pred_fallthru
        _
      %p127 = scmp.lt.s32.totalorder %s12, 2
      // Predicated region
      $region21: #{tpu_custom_call.1} parent=5 // pred_check
        %p128 = pneg %p127
      $region22: #{tpu_custom_call.1} parent=5 // pred_check_branch
        %130 = sbr.rel (%p128) target = $region24
      $region23: #{tpu_custom_call.1} parent=5 // pred_region
        // Predicated region
        $region25: #{tpu_custom_call.1} parent=23 // pred_check
          %p131 = pneg %p32
        $region26: #{tpu_custom_call.1} parent=23 // pred_check_branch
          %133 = sbr.rel (%p131) target = $region28
        $region27: #{tpu_custom_call.1} parent=23 // pred_region
          %p134 = scmp.lt.s32.totalorder %s12, 1
          %s135 = scalar_select %p134, %s12, 1
          %s136 = smul.addr %s135, 3
          %s137 = smul.addr %s136, 8
          %s138 = scalar_lea.vmem %s0, %s137
        $region28: #{tpu_custom_call.1} parent=23 // pred_fallthru
          _
      $region24: #{tpu_custom_call.1} parent=5 // pred_fallthru
        _
      %p139 = scmp.le.s32.totalorder 1, %s12
      %p140 = scmp.lt.s32.totalorder %s12, 3
      %p141 = pnand %p139, %p140
      %p142 = pneg %p141
      // Predicated region
      $region29: #{tpu_custom_call.1} parent=5 // pred_check
        _
      $region30: #{tpu_custom_call.1} parent=5 // pred_check_branch
        %144 = sbr.rel (%p141) target = $region32
      $region31: #{tpu_custom_call.1} parent=5 // pred_region
        %s145 = ssub.s32 %s12, 1
        %p146 = scmp.lt.s32.totalorder %s17, 1
        %s147 = scalar_select %p146, %s17, 1
        %s148 = smul.addr %s147, 3
        %s149 = smul.addr %s148, 8
        %s150 = scalar_lea.vmem %s0, %s149
        %p151 = pneg %p38
        %p152 = pneg %p35
        %p153 = pneg %p59
        %p154 = pneg %p56
        %p155 = pneg %p80
        %p156 = pneg %p77
        %p157 = pneg %p106
        %p158 = pneg %p103
        %s159 = sand.u32 %s93, 1
        %s160 = scalar_lea.sflag [#allocation3], %s159
        %s161 = sand.u32 %s93, 1
        %s162 = smul.addr %s161, 16
        %s163 = scalar_lea.vmem [#allocation2], %s162
        %p164 = scmp.lt.s32.totalorder %s17, 1
        %s165 = scalar_select %p164, %s17, 1
        %s166 = smul.addr %s165, 3
        %s167 = smul.addr %s166, 8
        %s168 = scalar_lea.vmem %s0, %s167
        %v170 = vld [vmem:[%s168] sm:$0xff]
        %v171 = vld [vmem:[%s168 + $0x8] sm:$0xff]
        %v172 = vld [vmem:[%s168 + $0x10] sm:$0x3]
        %v173 = vpack.c.bf16 %v171, %v170
        %v174 = vpack.c.bf16 %v172, %v172
        %v175 = vld [vmem:[%s1] sm:$0xf]
        %s176 = scalar_lea.vmem %s1, 4
        %v177 = vld [vmem:[%s176] sm:$0xf]
        %vm178 = vsmask.f32 7424
        %v180 = vshrl.u32 %v173, 16
        %v182 = vshll.u32 %v173, 16
        %v184 = vrot.slane %v182, 1
        %v185 = vor.u32 %v180, %v184
        %v187 = vshll.u32 %v174, 16
        %v189 = vrot.slane %v187, 1
        %v190 = vsel %vm178, %v185, %v189
        %vm191 = vcmask 64512
        %v193 = vsel %vm191, %v190, 0
        %vm195 = vcmask 1043456
        %v197 = vsel %vm195, %v177, 0
        %199 = vmatprep.subr.bf16.mxu0 0
        %200 = vmatpush1.bf16.msra.mxu0 0
        %201 = vmatprep.subr.bf16.mxu0 0
        %202 = vmatpush1.bf16.msra.mxu0 0
        %203 = vmatprep.subr.bf16.mxu0 0
        %204 = vmatpush1.bf16.msra.mxu0 0
        %205 = vmatprep.subr.bf16.mxu0 0
        %206 = vmatpush1.bf16.msra.mxu0 0
        %207 = vmatprep.subr.bf16.mxu0 0
        %208 = vmatpush1.bf16.msra.mxu0 0
        %209 = vmatprep.subr.bf16.mxu0 0
        %210 = vmatpush1.bf16.msra.mxu0 0
        %211 = vmatprep.subr.bf16.mxu0 0
        %212 = vmatpush1.bf16.msra.mxu0 0
        %213 = vmatprep.subr.bf16.mxu0 0
        %214 = vmatpush1.bf16.msra.mxu0 %v197
        %215 = vmatprep.subr.bf16.mxu0 0
        %216 = vmatpush2.bf16.msra.mxu0 0
        %217 = vmatprep.subr.bf16.mxu0 0
        %218 = vmatpush2.bf16.msra.mxu0 0
        %219 = vmatprep.subr.bf16.mxu0 0
        %220 = vmatpush2.bf16.msra.mxu0 0
        %221 = vmatprep.subr.bf16.mxu0 0
        %222 = vmatpush2.bf16.msra.mxu0 0
        %223 = vmatprep.subr.bf16.mxu0 0
        %224 = vmatpush2.bf16.msra.mxu0 0
        %225 = vmatprep.subr.bf16.mxu0 0
        %226 = vmatpush2.bf16.msra.mxu0 0
        %227 = vmatprep.subr.bf16.mxu0 0
        %228 = vmatpush2.bf16.msra.mxu0 0
        %229 = vmatprep.subr.bf16.mxu0 0
        %230 = vmatpush2.bf16.msra.mxu0 0
        %231 = vmatprep.mubr.bf16.mxu0 0
        %232 = vmatmul.mubr.bf16.gmra.mxu0 %v193
        %v233 = vpop.f32.mrf.mxu0
        %v234 = vadd.f32 0.0, %v233
        %v235 = vpop.f32.mrf.mxu0
        %v236 = vpop.f32.mrf.mxu0
        %v237 = vadd.f32 0.0, %v236
        %v238 = vpop.f32.mrf.mxu0
        %239 = vdwg.mxu0
        %v240 = vsel %vm191, %v173, 0
        %v243 = vsel %vm195, %v175, 0
        %245 = vmatprep.subr.bf16.mxu0 0
        %246 = vmatpush1.bf16.msra.mxu0 0
        %247 = vmatprep.subr.bf16.mxu0 0
        %248 = vmatpush1.bf16.msra.mxu0 0
        %249 = vmatprep.subr.bf16.mxu0 0
        %250 = vmatpush1.bf16.msra.mxu0 0
        %251 = vmatprep.subr.bf16.mxu0 0
        %252 = vmatpush1.bf16.msra.mxu0 0
        %253 = vmatprep.subr.bf16.mxu0 0
        %254 = vmatpush1.bf16.msra.mxu0 0
        %255 = vmatprep.subr.bf16.mxu0 0
        %256 = vmatpush1.bf16.msra.mxu0 0
        %257 = vmatprep.subr.bf16.mxu0 0
        %258 = vmatpush1.bf16.msra.mxu0 0
        %259 = vmatprep.subr.bf16.mxu0 0
        %260 = vmatpush1.bf16.msra.mxu0 %v243
        %261 = vmatprep.subr.bf16.mxu0 0
        %262 = vmatpush2.bf16.msra.mxu0 0
        %263 = vmatprep.subr.bf16.mxu0 0
        %264 = vmatpush2.bf16.msra.mxu0 0
        %265 = vmatprep.subr.bf16.mxu0 0
        %266 = vmatpush2.bf16.msra.mxu0 0
        %267 = vmatprep.subr.bf16.mxu0 0
        %268 = vmatpush2.bf16.msra.mxu0 0
        %269 = vmatprep.subr.bf16.mxu0 0
        %270 = vmatpush2.bf16.msra.mxu0 0
        %271 = vmatprep.subr.bf16.mxu0 0
        %272 = vmatpush2.bf16.msra.mxu0 0
        %273 = vmatprep.subr.bf16.mxu0 0
        %274 = vmatpush2.bf16.msra.mxu0 0
        %275 = vmatprep.subr.bf16.mxu0 0
        %276 = vmatpush2.bf16.msra.mxu0 0
        %277 = vmatprep.mubr.bf16.mxu0 0
        %278 = vmatmul.mubr.bf16.gmra.mxu0 %v240
        %v279 = vpop.f32.mrf.mxu0
        %v280 = vadd.f32 %v234, %v279
        %v281 = vpop.f32.mrf.mxu0
        %v282 = vpop.f32.mrf.mxu0
        %v283 = vadd.f32 %v237, %v282
        %v284 = vpop.f32.mrf.mxu0
        %285 = vdwg.mxu0
        %s286 = scalar_lea.vmem %s1, 8
        %v287 = vld [vmem:[%s286] sm:$0xf]
        %vm290 = vcmask 1046528
        %v291 = vrot.slane %v173, 1
        %v292 = vrot.slane %v174, 1
        %v293 = vsel %vm290, %v291, %v292
        %v295 = vsel %vm191, %v293, 0
        %v298 = vsel %vm195, %v287, 0
        %300 = vmatprep.subr.bf16.mxu0 0
        %301 = vmatpush1.bf16.msra.mxu0 0
        %302 = vmatprep.subr.bf16.mxu0 0
        %303 = vmatpush1.bf16.msra.mxu0 0
        %304 = vmatprep.subr.bf16.mxu0 0
        %305 = vmatpush1.bf16.msra.mxu0 0
        %306 = vmatprep.subr.bf16.mxu0 0
        %307 = vmatpush1.bf16.msra.mxu0 0
        %308 = vmatprep.subr.bf16.mxu0 0
        %309 = vmatpush1.bf16.msra.mxu0 0
        %310 = vmatprep.subr.bf16.mxu0 0
        %311 = vmatpush1.bf16.msra.mxu0 0
        %312 = vmatprep.subr.bf16.mxu0 0
        %313 = vmatpush1.bf16.msra.mxu0 0
        %314 = vmatprep.subr.bf16.mxu0 0
        %315 = vmatpush1.bf16.msra.mxu0 %v298
        %316 = vmatprep.subr.bf16.mxu0 0
        %317 = vmatpush2.bf16.msra.mxu0 0
        %318 = vmatprep.subr.bf16.mxu0 0
        %319 = vmatpush2.bf16.msra.mxu0 0
        %320 = vmatprep.subr.bf16.mxu0 0
        %321 = vmatpush2.bf16.msra.mxu0 0
        %322 = vmatprep.subr.bf16.mxu0 0
        %323 = vmatpush2.bf16.msra.mxu0 0
        %324 = vmatprep.subr.bf16.mxu0 0
        %325 = vmatpush2.bf16.msra.mxu0 0
        %326 = vmatprep.subr.bf16.mxu0 0
        %327 = vmatpush2.bf16.msra.mxu0 0
        %328 = vmatprep.subr.bf16.mxu0 0
        %329 = vmatpush2.bf16.msra.mxu0 0
        %330 = vmatprep.subr.bf16.mxu0 0
        %331 = vmatpush2.bf16.msra.mxu0 0
        %332 = vmatprep.mubr.bf16.mxu0 0
        %333 = vmatmul.mubr.bf16.gmra.mxu0 %v295
        %v334 = vpop.f32.mrf.mxu0
        %v335 = vadd.f32 0.0, %v334
        %v336 = vpop.f32.mrf.mxu0
        %v337 = vpop.f32.mrf.mxu0
        %v338 = vadd.f32 0.0, %v337
        %v339 = vpop.f32.mrf.mxu0
        %340 = vdwg.mxu0
        %v341 = vadd.f32 %v280, %v335
        %v342 = vadd.f32 %v283, %v338
        %v343 = vld [vmem:[%s2] sm:$0x1]
        %v345 = vlaneseq
        %v346 = vshrl.u32 %v345, 7
        %v347 = vsub.s32 0, %v346
        %v348 = vrot.slane %v343, %v347
        %v350 = vadd.f32 %v341, %v348
        %v351 = vadd.f32 %v342, %v348
        %v352 = vmul.f32 %v350, 0.5
        %v353 = vmul.f32 %v351, 0.5
        %v354 = vmul.f32 %v350, 0.044715
        %v355 = vmul.f32 %v351, 0.044715
        %v356 = vmul.f32 %v354, %v350
        %v357 = vmul.f32 %v355, %v351
        %v358 = vmul.f32 %v356, %v350
        %v359 = vmul.f32 %v357, %v351
        %v360 = vadd.f32 %v350, %v358
        %v361 = vadd.f32 %v351, %v359
        %v362 = vmul.f32 %v360, 0.7978846
        %v363 = vmul.f32 %v361, 0.7978846
        %v364 = vtanh.pop %v362
        %v365 = vtanh.pop %v363
        %v366 = vadd.f32 %v364, 1.0
        %v367 = vadd.f32 %v365, 1.0
        %v368 = vmul.f32 %v352, %v366
        %v369 = vmul.f32 %v353, %v367
        %vm370 = vcmask 261120
        %371 = vst.msk [vmem:[%s163] sm:$0xff] %vm370, %v368
        %372 = vst.msk [vmem:[%s163 + $0x8] sm:$0xff] %vm370, %v369
        %s373 = sand.u32 %s93, 1
        %s374 = scalar_lea.sflag [#allocation3], %s373
        %s375 = sand.u32 %s93, 1
        %s376 = smul.addr %s375, 16
        %s377 = scalar_lea.vmem [#allocation2], %s376
        // Predicated region
        $region33: #{tpu_custom_call.1} parent=31 // pred_check
          %p378 = pneg %p103
        $region34: #{tpu_custom_call.1} parent=31 // pred_check_branch
          %380 = sbr.rel (%p378) target = $region36
        $region35: #{tpu_custom_call.1} parent=31 // pred_region
          %s382 = ssub.s32 256, 256
          %383 = vsyncadd %s374, %s382
          %s384 = smul.addr %s17, 2
          %s385 = smul.addr %s384, 128
          %s386 = scalar_lea.hbm %s3, %s385
          %s387 = sshll.u32 %s377, 4
          %s388 = int_to_ptr.vmem [resolvable:$true] %s387
          %393 = dma.vmem_to_hbm [thread:$0]  %s388, 256, %s386, %s374, 128, 128, 8
        $region36: #{tpu_custom_call.1} parent=31 // pred_fallthru
          _
      $region32: #{tpu_custom_call.1} parent=5 // pred_fallthru
        _
      %p394 = scmp.le.s32.totalorder 2, %s12
      // Predicated region
      $region37: #{tpu_custom_call.1} parent=5 // pred_check
        %p395 = pneg %p394
      $region38: #{tpu_custom_call.1} parent=5 // pred_check_branch
        %397 = sbr.rel (%p395) target = $region40
      $region39: #{tpu_custom_call.1} parent=5 // pred_region
        %s398 = ssub.s32 %s12, 2
        // Predicated region
        $region41: #{tpu_custom_call.1} parent=39 // pred_check
          %p399 = pneg %p109
        $region42: #{tpu_custom_call.1} parent=39 // pred_check_branch
          %401 = sbr.rel (%p399) target = $region44
        $region43: #{tpu_custom_call.1} parent=39 // pred_region
          %s402 = sand.u32 %s94, 1
          %s403 = scalar_lea.sflag [#allocation3], %s402
          %s404 = sand.u32 %s94, 1
          %s405 = smul.addr %s404, 16
          %s406 = scalar_lea.vmem [#allocation2], %s405
          %407 = dma.done %s403, 256
        $region44: #{tpu_custom_call.1} parent=39 // pred_fallthru
          _
      $region40: #{tpu_custom_call.1} parent=5 // pred_fallthru
        _
    $region6: #{tpu_custom_call.1} parent=1 // loop_footer
      %s16 = sadd.s32 1, %s12
    $region7: #{tpu_custom_call.1} parent=1 // loop_footer_branch
      %11 = sbr.rel target = $region3
    $region8: #{tpu_custom_call.1} parent=1 // loop_exit
      _
    %408 = vsyncpa [#allocation3], 1
    %s409 = scalar_lea.sflag [#allocation3], 1
    %410 = vsyncpa %s409, 1

</llo_original>
